<compile_context>
chip_gen: v7x
topology: tpu7x:2x2x1
jax: 0.10.0
libtpu: 0.0.40
codegen_flags: <defaults>
</compile_context>

<pallas_src>
import functools

import jax
import jax.numpy as jnp
from jax.experimental import pallas as pl
from jax.experimental.pallas import tpu as pltpu


def _ce_partial_kernel(logits_ref, labels_ref, out_ref, m_sc, l_sc, p_sc,
                       *, tile_b, tile_c, true_b, true_c):
    """Online log-softmax cross-entropy partial sums.

    logits_ref: (TILE_B, TILE_C) input dtype — boundary blocks may hold garbage
    labels_ref: (TILE_B, 1) int32            — resident across the class axis
    out_ref   : (1, 8, 128) f32              — lane-dense per-batch-block partial sum
    m_sc/l_sc/p_sc: (TILE_B, 1) f32 scratch  — running max / sum-exp / picked logit
    """
    bi = pl.program_id(0)
    ci = pl.program_id(1)

    @pl.when(ci == 0)
    def _():
        m_sc[...] = jnp.full_like(m_sc, -jnp.inf)
        l_sc[...] = jnp.zeros_like(l_sc)
        p_sc[...] = jnp.zeros_like(p_sc)

    x = logits_ref[...].astype(jnp.float32)                      # (TILE_B, TILE_C)
    lbl = labels_ref[...]                                        # (TILE_B, 1)

    # Global class-column ids; mask out-of-range / boundary-garbage columns
    # BEFORE the row max so they contribute exp(-inf) = 0 to the sum.
    col = jax.lax.broadcasted_iota(jnp.int32, x.shape, 1) + ci * tile_c
    valid_col = col < true_c
    xm = jnp.where(valid_col, x, -jnp.inf)

    # Online logsumexp update.
    m_prev = m_sc[...]
    m_new = jnp.maximum(m_prev, jnp.max(xm, axis=-1, keepdims=True))
    l_sc[...] = (jnp.exp(m_prev - m_new) * l_sc[...]
                 + jnp.sum(jnp.exp(xm - m_new), axis=-1, keepdims=True))
    m_sc[...] = m_new

    # Pick the label logit from the raw x (row max cancels in the final expr).
    p_sc[...] += jnp.sum(jnp.where((col == lbl) & valid_col, x, 0.0),
                         axis=-1, keepdims=True)

    @pl.when(ci == pl.num_programs(1) - 1)
    def _():
        per_row = m_sc[...] + jnp.log(l_sc[...]) - p_sc[...]     # (TILE_B, 1)
        # Mask rows that are batch-boundary padding (global row >= true_b).
        row_ids = jax.lax.broadcasted_iota(jnp.int32, per_row.shape, 0) + bi * tile_b
        per_row = jnp.where(row_ids < true_b, per_row, 0.0)
        # Lane-dense full-tile store (avoids masked vst.msk partial stores).
        out_ref[...] = jnp.full(out_ref.shape, jnp.sum(per_row), dtype=jnp.float32)


def _vmem_capacity_bytes():
    try:
        info = pltpu.get_tpu_info()
    except Exception:
        return 128 << 20
    for attr in ("vmem_capacity_bytes", "vmem_size_bytes", "vmem_bytes"):
        v = getattr(info, attr, None)
        if v:
            return int(v)
    return 128 << 20


def _round_up(x, m):
    return ((x + m - 1) // m) * m


def contrastive_loss_for_classification(logits, labels, margin=1.0,
                                         tile_b=None, tile_c=None):
    """Forward pass of ContrastiveLossForClassification (CrossEntropyLoss, mean).

    `margin` is unused in the reference forward pass (kept for signature parity).
    `tile_b` / `tile_c` optionally override the auto-derived tile sizes (testing);
    `tile_c` must be C or a multiple of 128.
    """
    del margin
    B, C = logits.shape
    itemsize = jnp.dtype(logits.dtype).itemsize

    # ---- generation-aware budgets ----
    vmem_cap = _vmem_capacity_bytes()
    small_vmem = vmem_cap <= (64 << 20)                      # v7x-class TensorCore
    ws_target = (24 << 20) if small_vmem else (60 << 20)     # per-step working set
    vmem_cap_limit = (40 << 20) if small_vmem else (100 << 20)

    C_phys = _round_up(C, 128)
    # per-element VMEM cost: double-buffered input + ~4 f32 compute temporaries
    per_elem = 2 * itemsize + 4 * 4

    # ---- class tile: single pass when modest, online LSE over C when large ----
    if tile_c is not None:
        TILE_C = int(tile_c)
    elif C_phys <= 8192:
        TILE_C = C                       # full class dim (legal even if C % 128 != 0)
    else:
        TILE_C = 2048                    # fixed 128-multiple lane width, flash-style LSE
    TILE_C_phys = min(_round_up(TILE_C, 128), C_phys)
    num_c = -(-C // TILE_C)

    # ---- batch tile: as many rows as the working-set target allows ----
    if tile_b is None:
        max_rows = max(8, ws_target // (TILE_C_phys * per_elem))
        TILE_B = max(8, (max_rows // 8) * 8)
    else:
        TILE_B = max(8, (int(tile_b) // 8) * 8)
    if B >= 16:
        # keep >= 2 batch blocks so the "parallel" axis spans both v7x TensorCores
        TILE_B = min(TILE_B, _round_up(-(-B // 2), 8))
    TILE_B = min(TILE_B, _round_up(B, 8))                    # don't over-tile tiny batches
    num_b = -(-B // TILE_B)

    # ---- explicit VMEM budget: I/O buffers + in-kernel f32 intermediates ----
    bytes_est = (TILE_B * TILE_C_phys * per_elem             # logits dbl-buf + f32 temps
                 + 2 * TILE_B * 128 * 4                      # labels block (lane-padded)
                 + 2 * 8 * 128 * 4                           # output block
                 + 3 * TILE_B * 128 * 4)                     # m / l / picked scratch
    vmem_limit = int(min(max(bytes_est + (4 << 20), 16 << 20), vmem_cap_limit))

    labels2d = labels.astype(jnp.int32).reshape(B, 1)

    kernel = functools.partial(_ce_partial_kernel, tile_b=TILE_B, tile_c=TILE_C,
                               true_b=B, true_c=C)

    partials = pl.pallas_call(
        kernel,
        out_shape=jax.ShapeDtypeStruct((num_b, 8, 128), jnp.float32),
        grid=(num_b, num_c),
        in_specs=[
            pl.BlockSpec((TILE_B, TILE_C), lambda bi, ci: (bi, ci)),
            pl.BlockSpec((TILE_B, 1), lambda bi, ci: (bi, 0)),
        ],
        out_specs=pl.BlockSpec((1, 8, 128), lambda bi, ci: (bi, 0, 0)),
        scratch_shapes=[pltpu.VMEM((TILE_B, 1), jnp.float32)] * 3,
        compiler_params=pltpu.CompilerParams(
            dimension_semantics=("parallel", "arbitrary"),
            vmem_limit_bytes=vmem_limit,
        ),
    )(logits, labels2d)

    # tiny finalize on the XLA side: sum of per-block partials / true batch size
    return jnp.sum(partials[:, 0, 0]) / B


def _reference_loss(logits, labels):
    # pure-JAX reference mirroring torch.nn.CrossEntropyLoss (mean reduction)
    logits = logits.astype(jnp.float32)
    lse = jax.scipy.special.logsumexp(logits, axis=-1)
    picked = jnp.take_along_axis(logits, labels[:, None].astype(jnp.int32), axis=-1)[:, 0]
    return jnp.mean(lse - picked)


if __name__ == "__main__":
    key = jax.random.PRNGKey(0)

    def _run_case(k, B, C, dtype, tol, **kw):
        k1, k2 = jax.random.split(k)
        logits = jax.random.normal(k1, (B, C), dtype=jnp.float32).astype(dtype)
        labels = jax.random.randint(k2, (B,), 0, C, dtype=jnp.int32)
        loss = jax.block_until_ready(
            contrastive_loss_for_classification(logits, labels, **kw))
        ref = _reference_loss(logits, labels)
        assert jnp.allclose(loss, ref, atol=tol, rtol=tol), (B, C, dtype, loss, ref)

    keys = jax.random.split(key, 4)
    # 1: single block on both axes; C not a multiple of 128 (full-dim class block)
    _run_case(keys[0], 8, 32, jnp.float32, 1e-5)
    # 2: multiple batch blocks + boundary batch rows (B % TILE_B != 0), no padding
    _run_case(keys[1], 20, 40, jnp.float32, 1e-5, tile_b=8)
    # 3: multiple class blocks -> online logsumexp path + boundary class columns
    _run_case(keys[2], 16, 300, jnp.float32, 1e-5, tile_c=128)
    # 4: bf16 logits stay bf16 on the DMA path; f32 math inside the kernel
    _run_case(keys[3], 16, 48, jnp.bfloat16, 1e-4)

    print("KERNEL_OK")
</pallas_src>

<mosaic_0001>
module attributes {stable_mosaic.version = 11 : i64} {
  func.func @_ce_partial_kernel(%arg0: i32, %arg1: i32, %arg2: memref<8x32xf32, #tpu.memory_space<vmem>>, %arg3: memref<8x1xi32, #tpu.memory_space<vmem>>, %arg4: memref<1x8x128xf32, #tpu.memory_space<vmem>>, %arg5: memref<8x1xf32, #tpu.memory_space<vmem>>, %arg6: memref<8x1xf32, #tpu.memory_space<vmem>>, %arg7: memref<8x1xf32, #tpu.memory_space<vmem>>) attributes {dimension_semantics = [#tpu.dimension_semantics<parallel>, #tpu.dimension_semantics<arbitrary>], iteration_bounds = array<i64: 1, 1>, scalar_prefetch = 0 : i64, scratch_operands = 3 : i64, tpu.core_type = #tpu.core_type<tc>, window_params = [{transform_indices = @transform_0, window_bounds = array<i64: 8, 32>}, {transform_indices = @transform_1, window_bounds = array<i64: 8, 1>}, {transform_indices = @transform_2, window_bounds = array<i64: 1, 8, 128>}]} {
    %c0_i32 = arith.constant 0 : i32
    %0 = arith.cmpi eq, %arg1, %c0_i32 : i32
    %1 = arith.extui %0 : i1 to i32
    %c0_i32_0 = arith.constant 0 : i32
    %2 = arith.cmpi ne, %1, %c0_i32_0 : i32
    scf.if %2 {
      %cst_23 = arith.constant 0xFF800000 : f32
      %42 = vector.broadcast %cst_23 : f32 to vector<8x1xf32>
      %c0_24 = arith.constant 0 : index
      %c0_25 = arith.constant 0 : index
      %43 = vector.load %arg5[%c0_24, %c0_25] : memref<8x1xf32, #tpu.memory_space<vmem>>, vector<8x1xf32>
      tpu.vector_store %arg5[%c0_24, %c0_25], %42 {strides = array<i32>} : memref<8x1xf32, #tpu.memory_space<vmem>>, vector<8x1xf32>,
      %cst_26 = arith.constant 0.000000e+00 : f32
      %44 = vector.broadcast %cst_26 : f32 to vector<8x1xf32>
      %c0_27 = arith.constant 0 : index
      %c0_28 = arith.constant 0 : index
      %45 = vector.load %arg6[%c0_27, %c0_28] : memref<8x1xf32, #tpu.memory_space<vmem>>, vector<8x1xf32>
      tpu.vector_store %arg6[%c0_27, %c0_28], %44 {strides = array<i32>} : memref<8x1xf32, #tpu.memory_space<vmem>>, vector<8x1xf32>,
      %cst_29 = arith.constant 0.000000e+00 : f32
      %46 = vector.broadcast %cst_29 : f32 to vector<8x1xf32>
      %c0_30 = arith.constant 0 : index
      %c0_31 = arith.constant 0 : index
      %47 = vector.load %arg7[%c0_30, %c0_31] : memref<8x1xf32, #tpu.memory_space<vmem>>, vector<8x1xf32>
      tpu.vector_store %arg7[%c0_30, %c0_31], %46 {strides = array<i32>} : memref<8x1xf32, #tpu.memory_space<vmem>>, vector<8x1xf32>,
    } else {
    }
    %c0 = arith.constant 0 : index
    %c0_1 = arith.constant 0 : index
    %3 = vector.load %arg2[%c0, %c0_1] : memref<8x32xf32, #tpu.memory_space<vmem>>, vector<8x32xf32>
    %c0_2 = arith.constant 0 : index
    %c0_3 = arith.constant 0 : index
    %4 = vector.load %arg3[%c0_2, %c0_3] : memref<8x1xi32, #tpu.memory_space<vmem>>, vector<8x1xi32>
    %5 = tpu.iota {dimensions = array<i32: 1>} : vector<8x32xi32>
    %c32_i32 = arith.constant 32 : i32
    %6 = arith.muli %arg1, %c32_i32 : i32
    %7 = vector.broadcast %6 : i32 to vector<8x32xi32>
    %8 = arith.addi %5, %7 : vector<8x32xi32>
    %c32_i32_4 = arith.constant 32 : i32
    %9 = vector.broadcast %c32_i32_4 : i32 to vector<8x32xi32>
    %10 = arith.cmpi slt, %8, %9 : vector<8x32xi32>
    %cst = arith.constant 0xFF800000 : f32
    %11 = vector.broadcast %cst : f32 to vector<8x32xf32>
    %12 = arith.select %10, %3, %11 : vector<8x32xi1>, vector<8x32xf32>
    %c0_5 = arith.constant 0 : index
    %c0_6 = arith.constant 0 : index
    %13 = vector.load %arg5[%c0_5, %c0_6] : memref<8x1xf32, #tpu.memory_space<vmem>>, vector<8x1xf32>
    %cst_7 = arith.constant dense<0xFF800000> : vector<8xf32>
    %14 = vector.multi_reduction <maximumf>, %12, %cst_7 [1] : vector<8x32xf32> to vector<8xf32>
    %15 = vector.shape_cast %14 : vector<8xf32> to vector<8x1xf32>
    %16 = arith.maximumf %13, %15 : vector<8x1xf32>
    %17 = arith.subf %13, %16 : vector<8x1xf32>
    %18 = math.exp %17 : vector<8x1xf32>
    %c0_8 = arith.constant 0 : index
    %c0_9 = arith.constant 0 : index
    %19 = vector.load %arg6[%c0_8, %c0_9] : memref<8x1xf32, #tpu.memory_space<vmem>>, vector<8x1xf32>
    %20 = arith.mulf %18, %19 : vector<8x1xf32>
    %21 = vector.broadcast %16 : vector<8x1xf32> to vector<8x32xf32>
    %22 = arith.subf %12, %21 : vector<8x32xf32>
    %23 = math.exp %22 : vector<8x32xf32>
    %cst_10 = arith.constant dense<0.000000e+00> : vector<8xf32>
    %24 = vector.multi_reduction <add>, %23, %cst_10 [1] : vector<8x32xf32> to vector<8xf32>
    %25 = vector.shape_cast %24 : vector<8xf32> to vector<8x1xf32>
    %26 = arith.addf %20, %25 : vector<8x1xf32>
    %c0_11 = arith.constant 0 : index
    %c0_12 = arith.constant 0 : index
    %27 = vector.load %arg6[%c0_11, %c0_12] : memref<8x1xf32, #tpu.memory_space<vmem>>, vector<8x1xf32>
    tpu.vector_store %arg6[%c0_11, %c0_12], %26 {strides = array<i32>} : memref<8x1xf32, #tpu.memory_space<vmem>>, vector<8x1xf32>,
    %c0_13 = arith.constant 0 : index
    %c0_14 = arith.constant 0 : index
    %28 = vector.load %arg5[%c0_13, %c0_14] : memref<8x1xf32, #tpu.memory_space<vmem>>, vector<8x1xf32>
    tpu.vector_store %arg5[%c0_13, %c0_14], %16 {strides = array<i32>} : memref<8x1xf32, #tpu.memory_space<vmem>>, vector<8x1xf32>,
    %c0_15 = arith.constant 0 : index
    %c0_16 = arith.constant 0 : index
    %29 = vector.load %arg7[%c0_15, %c0_16] : memref<8x1xf32, #tpu.memory_space<vmem>>, vector<8x1xf32>
    %30 = vector.broadcast %4 : vector<8x1xi32> to vector<8x32xi32>
    %31 = arith.cmpi eq, %8, %30 : vector<8x32xi32>
    %32 = arith.andi %31, %10 : vector<8x32xi1>
    %cst_17 = arith.constant 0.000000e+00 : f32
    %33 = vector.broadcast %cst_17 : f32 to vector<8x32xf32>
    %34 = arith.select %32, %3, %33 : vector<8x32xi1>, vector<8x32xf32>
    %cst_18 = arith.constant dense<0.000000e+00> : vector<8xf32>
    %35 = vector.multi_reduction <add>, %34, %cst_18 [1] : vector<8x32xf32> to vector<8xf32>
    %36 = vector.shape_cast %35 : vector<8xf32> to vector<8x1xf32>
    %37 = arith.addf %29, %36 : vector<8x1xf32>
    %c0_19 = arith.constant 0 : index
    %c0_20 = arith.constant 0 : index
    %38 = vector.load %arg7[%c0_19, %c0_20] : memref<8x1xf32, #tpu.memory_space<vmem>>, vector<8x1xf32>
    tpu.vector_store %arg7[%c0_19, %c0_20], %37 {strides = array<i32>} : memref<8x1xf32, #tpu.memory_space<vmem>>, vector<8x1xf32>,
    %c0_i32_21 = arith.constant 0 : i32
    %39 = arith.cmpi eq, %arg1, %c0_i32_21 : i32
    %40 = arith.extui %39 : i1 to i32
    %c0_i32_22 = arith.constant 0 : i32
    %41 = arith.cmpi ne, %40, %c0_i32_22 : i32
    scf.if %41 {
      %c0_23 = arith.constant 0 : index
      %c0_24 = arith.constant 0 : index
      %42 = vector.load %arg5[%c0_23, %c0_24] : memref<8x1xf32, #tpu.memory_space<vmem>>, vector<8x1xf32>
      %c0_25 = arith.constant 0 : index
      %c0_26 = arith.constant 0 : index
      %43 = vector.load %arg6[%c0_25, %c0_26] : memref<8x1xf32, #tpu.memory_space<vmem>>, vector<8x1xf32>
      %44 = math.log %43 : vector<8x1xf32>
      %45 = arith.addf %42, %44 : vector<8x1xf32>
      %c0_27 = arith.constant 0 : index
      %c0_28 = arith.constant 0 : index
      %46 = vector.load %arg7[%c0_27, %c0_28] : memref<8x1xf32, #tpu.memory_space<vmem>>, vector<8x1xf32>
      %47 = arith.subf %45, %46 : vector<8x1xf32>
      %48 = tpu.iota {dimensions = array<i32: 0>} : vector<8x1xi32>
      %c8_i32 = arith.constant 8 : i32
      %49 = arith.muli %arg0, %c8_i32 : i32
      %50 = vector.broadcast %49 : i32 to vector<8x1xi32>
      %51 = arith.addi %48, %50 : vector<8x1xi32>
      %c8_i32_29 = arith.constant 8 : i32
      %52 = vector.broadcast %c8_i32_29 : i32 to vector<8x1xi32>
      %53 = arith.cmpi slt, %51, %52 : vector<8x1xi32>
      %cst_30 = arith.constant 0.000000e+00 : f32
      %54 = vector.broadcast %cst_30 : f32 to vector<8x1xf32>
      %55 = arith.select %53, %47, %54 : vector<8x1xi1>, vector<8x1xf32>
      %56 = vector.shape_cast %55 : vector<8x1xf32> to vector<1x8x1xf32>
      %cst_31 = arith.constant dense<0.000000e+00> : vector<1xf32>
      %57 = vector.multi_reduction <add>, %56, %cst_31 [1, 2] : vector<1x8x1xf32> to vector<1xf32>
      %58 = vector.shape_cast %57 : vector<1xf32> to vector<1x1x1xf32>
      %59 = vector.extract %58[0, 0, 0] : f32 from vector<1x1x1xf32>
      %60 = vector.broadcast %59 : f32 to vector<1x8x128xf32>
      %c0_32 = arith.constant 0 : index
      %c0_33 = arith.constant 0 : index
      %c0_34 = arith.constant 0 : index
      %61 = vector.load %arg4[%c0_32, %c0_33, %c0_34] : memref<1x8x128xf32, #tpu.memory_space<vmem>>, vector<1x8x128xf32>
      tpu.vector_store %arg4[%c0_32, %c0_33, %c0_34], %60 {strides = array<i32>} : memref<1x8x128xf32, #tpu.memory_space<vmem>>, vector<1x8x128xf32>,
    } else {
    }
    return
  }
  func.func @transform_0(%arg0: i32, %arg1: i32) -> (i32, i32) {
    %c0_i32 = arith.constant 0 : i32
    return %arg0, %arg1 : i32, i32
  }
  func.func @transform_1(%arg0: i32, %arg1: i32) -> (i32, i32) {
    %c0_i32 = arith.constant 0 : i32
    %c0_i32_0 = arith.constant 0 : i32
    return %arg0, %c0_i32 : i32, i32
  }
  func.func @transform_2(%arg0: i32, %arg1: i32) -> (i32, i32, i32) {
    %c0_i32 = arith.constant 0 : i32
    %c0_i32_0 = arith.constant 0 : i32
    %c0_i32_1 = arith.constant 0 : i32
    return %arg0, %c0_i32, %c0_i32_0 : i32, i32, i32
  }
}

</mosaic_0001>

<llo_original>
// kernel: tpu_custom_call.1
$region0: #{tpu_custom_call.1}
  #allocation0 [shape = 'u32[]', space=smem, size = 0x4, offset = 0x4, fixed_abs, tag = 'smem constant byte address 0x4 - core index']
  #allocation1 [shape = 'u32[144,128]{1,0:T(1,128)}', space=vmem, size = 0x12000, scoped, tag = 'internal scratch']
  #allocation2 [shape = 'f32[8,1]{1,0:T(8,128)}', space=vmem, size = 0x1000, scoped, tag = 'scratch operand']
  #allocation3 [shape = 'f32[8,1]{1,0:T(8,128)}', space=vmem, size = 0x1000, scoped, tag = 'scratch operand']
  #allocation4 [shape = 'f32[8,1]{1,0:T(8,128)}', space=vmem, size = 0x1000, scoped, tag = 'scratch operand']
  %s0 = inlined_call_operand.vmem [shape: f32[8,32], index: 0, kind: input, shape index: {}]
  %s1 = inlined_call_operand.vmem [shape: s32[8,1], index: 1, kind: input, shape index: {}]
  %s2 = inlined_call_operand.hbm [shape: f32[1,8,128], index: 2, kind: output, shape index: {}]
  %s3 = sld [smem:[#allocation0]]
  $region26: #{tpu_custom_call.1} parent=0
    _
  %s5 = ssub.s32 1, %s3
  %s6 = scalar_select 0, %s5, %s3
  $region1: #{tpu_custom_call.1} parent=0
    #allocation5 [shape = 'u8[4096]{0}', space=vmem, size = 0x1000, scoped, tag = 'output window, operand 0, single buffered']
    #allocation6 [shape = 's32[1]{0}', space=sflag, size = 0x4, scoped, tag = 'scoped memory for tpu_custom_call.1']
    %7 = vsyncpa [#allocation6], 0
    // Predicated region
    $region2: #{tpu_custom_call.1} parent=1 // pred_check
      _
    $region3: #{tpu_custom_call.1} parent=1 // pred_check_branch
      %9 = sbr.rel (0) target = $region5
    $region4: #{tpu_custom_call.1} parent=1 // pred_region
      _
    $region5: #{tpu_custom_call.1} parent=1 // pred_fallthru
      _
    // Predicated region
    $region6: #{tpu_custom_call.1} parent=1 // pred_check
      _
    $region7: #{tpu_custom_call.1} parent=1 // pred_check_branch
      %11 = sbr.rel (0) target = $region9
    $region8: #{tpu_custom_call.1} parent=1 // pred_region
      _
    $region9: #{tpu_custom_call.1} parent=1 // pred_fallthru
      _
    %p12 = scmp.eq.s32.totalorder 0, 0
    // Predicated region
    $region10: #{tpu_custom_call.1} parent=1 // pred_check
      %p13 = pneg %p12
    $region11: #{tpu_custom_call.1} parent=1 // pred_check_branch
      %15 = sbr.rel (%p13) target = $region13
    $region12: #{tpu_custom_call.1} parent=1 // pred_region
      %vm16 = vcmask 7168
      %17 = vst.msk [vmem:[#allocation2] sm:$0xff] %vm16, -inf
      %18 = vst.msk [vmem:[#allocation3] sm:$0xff] %vm16, 0.0
      %19 = vst.msk [vmem:[#allocation4] sm:$0xff] %vm16, 0.0
    $region13: #{tpu_custom_call.1} parent=1 // pred_fallthru
      _
    %v20 = vld [vmem:[%s0] sm:$0xff]
    %v21 = vld [vmem:[%s1] sm:$0xff]
    %v22 = vlaneseq
    %v23 = vand.u32 %v22, 127
    %s24 = smul.u32 0, 32
    %v25 = vstv %s24
    %v26 = vadd.s32 %v23, %v25
    %vm27 = vcmp.lt.s32.totalorder %v26, 32
    %v28 = vsel %vm27, %v20, -inf
    %v29 = vld [vmem:[#allocation2] sm:$0xff]
    %vm30 = vcmask 261120
    %v31 = vsel %vm30, %v28, -inf
    %32 = vmax.xlane.f32.xlu0 %v31
    %v33 = vpop.xlane.xlu0 %32
    %v34 = vmax.f32 %v29, %v33
    %v35 = vsub.f32 %v29, %v34
    %v36 = vmul.f32 %v35, 1.442695
    %v37 = vpow.pop %v36
    %v38 = vld [vmem:[#allocation3] sm:$0xff]
    %v39 = vmul.f32 %v37, %v38
    %41 = vset.pattern.permute.xlu0 0
    %42 = vperm.xlu0 %41, %v34
    %v43 = vpop.permute.xlu0 %42
    %v45 = vsub.f32 %v28, %v43
    %v46 = vmul.f32 %v45, 1.442695
    %v47 = vpow.pop %v46
    %v48 = vsel %vm30, %v47, 0.0
    %49 = vadd.xlane.f32.xlu0 %v48
    %v50 = vpop.xlane.xlu0 %49
    %v51 = vadd.f32 %v39, %v50
    %vm52 = vcmask 7168
    %53 = vst.msk [vmem:[#allocation3] sm:$0xff] %vm52, %v51
    %54 = vst.msk [vmem:[#allocation2] sm:$0xff] %vm52, %v34
    %v55 = vld [vmem:[#allocation4] sm:$0xff]
    %56 = vset.pattern.permute.xlu0 0
    %57 = vperm.xlu0 %56, %v21
    %v58 = vpop.permute.xlu0 %57
    %vm59 = vcmp.eq.s32.totalorder %v26, %v58
    %vm60 = vmand %vm59, %vm27
    %v61 = vsel %vm60, %v20, 0.0
    %v62 = vsel %vm30, %v61, 0.0
    %63 = vadd.xlane.f32.xlu0 %v62
    %v64 = vpop.xlane.xlu0 %63
    %v65 = vadd.f32 %v55, %v64
    %66 = vst.msk [vmem:[#allocation4] sm:$0xff] %vm52, %v65
    // Predicated region
    $region14: #{tpu_custom_call.1} parent=1 // pred_check
      %p67 = pneg %p12
    $region15: #{tpu_custom_call.1} parent=1 // pred_check_branch
      %69 = sbr.rel (%p67) target = $region17
    $region16: #{tpu_custom_call.1} parent=1 // pred_region
      %v70 = vld [vmem:[#allocation2] sm:$0xff]
      %v71 = vld [vmem:[#allocation3] sm:$0xff]
      %v72 = vlog2.pop %v71
      %v73 = vmul.f32 %v72, 0.6931472
      %v74 = vadd.f32 %v70, %v73
      %v75 = vld [vmem:[#allocation4] sm:$0xff]
      %v76 = vsub.f32 %v74, %v75
      %v77 = vlaneseq
      %v78 = vshrl.u32 %v77, 7
      %s79 = smul.u32 0, 8
      %v80 = vstv %s79
      %v81 = vadd.s32 %v78, %v80
      %vm82 = vcmp.lt.s32.totalorder %v81, 8
      %v83 = vsel %vm82, %v76, 0.0
      %v84 = vsel %vm52, %v83, 0.0
      %85 = vadd.xlane.f32.xlu0 %v84
      %v86 = vpop.xlane.xlu0 %85
      %v87 = vrot.slane %v86, 4
      %v88 = vadd.f32 %v86, %v87
      %v89 = vrot.slane %v88, 2
      %v90 = vadd.f32 %v88, %v89
      %v91 = vrot.slane %v90, 1
      %v92 = vadd.f32 %v90, %v91
      %s93 = vtos %v92
      %v94 = vstv %s93
      %95 = vst [vmem:[#allocation5] sm:$0xff] %v94
    $region17: #{tpu_custom_call.1} parent=1 // pred_fallthru
      _
    // Predicated region
    $region18: #{tpu_custom_call.1} parent=1 // pred_check
      _
    $region19: #{tpu_custom_call.1} parent=1 // pred_check_branch
      %97 = sbr.rel (0) target = $region21
    $region20: #{tpu_custom_call.1} parent=1 // pred_region
      %s99 = ssub.s32 128, 128
      %100 = vsyncadd [#allocation6], %s99
      %s102 = sshll.u32 [#allocation5], 4
      %s103 = int_to_ptr.vmem [resolvable:$true] %s102
      %105 = dma.vmem_to_hbm [thread:$0]  %s103, 128, %s2, [#allocation6]
    $region21: #{tpu_custom_call.1} parent=1 // pred_fallthru
      _
    // Predicated region
    $region22: #{tpu_custom_call.1} parent=1 // pred_check
      _
    $region23: #{tpu_custom_call.1} parent=1 // pred_check_branch
      %107 = sbr.rel (0) target = $region25
    $region24: #{tpu_custom_call.1} parent=1 // pred_region
      %108 = dma.done [#allocation6], 128
    $region25: #{tpu_custom_call.1} parent=1 // pred_fallthru
      _
    %109 = vsyncpa [#allocation6], 1

</llo_original>
